<compile_context>
chip_gen: v7x
topology: tpu7x:2x2x1
jax: 0.10.0
libtpu: 0.0.40
codegen_flags: <defaults>
</compile_context>

<pallas_src>
import functools

import jax
import jax.numpy as jnp
from jax.experimental import pallas as pl
from jax.experimental.pallas import tpu as pltpu


_LANE = 128
_BLOCK_VMEM_BUDGET = 24 * 1024 * 1024   # bytes of VMEM for pipelined blocks
_VMEM_LIMIT_BYTES = 32 * 1024 * 1024    # <= physical VMEM on v5e/v6e/v7x
_MEGACORE_SPLIT_THRESHOLD = 2048        # split into >=2 steps above this


def _round_up(x, m):
    return ((x + m - 1) // m) * m


def _sublane_granule(dtype):
    # f32 -> 8, bf16 -> 16, int8/fp8 -> 32 (packed sublane layouts)
    return max(8, 32 // jnp.dtype(dtype).itemsize)


def _choose_tile_m(n_nodes, in_cols, in_itemsize, hidden, out_itemsize, granule):
    """Node-tile size: double-buffered input + output blocks (plus the f32
    matmul intermediate) fit in _BLOCK_VMEM_BUDGET, each grid step moves
    several MiB of HBM, and large graphs keep >= 2 grid steps so both v7x
    TensorCores are fed."""
    in_lanes = _round_up(in_cols, _LANE)      # VMEM lane-pads the minor dim
    hid_lanes = _round_up(hidden, _LANE)
    row_bytes = (2 * in_lanes * in_itemsize   # double-buffered input block
                 + 2 * hid_lanes * out_itemsize  # double-buffered output block
                 + hid_lanes * 4)             # f32 matmul intermediate
    tile = max(granule, (_BLOCK_VMEM_BUDGET // row_bytes) // granule * granule)
    if n_nodes > _MEGACORE_SPLIT_THRESHOLD:
        # keep at least two grid steps (v7x megacore sharding)
        tile = min(tile, _round_up(pl.cdiv(n_nodes, 2), granule))
    # small graphs: a single tile covering all rows (ragged tail is masked)
    return min(tile, _round_up(max(n_nodes, 1), granule))


# --------------------------------------------------------------------------
# Kernels
# --------------------------------------------------------------------------
def _dense_kernel(x_ref, w_ref, o_ref):
    # One MXU matmul per node tile; K is tiny and fully hidden under DMA.
    # Scale is pre-folded into w, so the store path has no extra vmul.
    o_ref[...] = jnp.dot(
        x_ref[...].astype(w_ref.dtype), w_ref[...],
        preferred_element_type=jnp.float32,
    ).astype(o_ref.dtype)


def _onehot_kernel(ids_ref, w_ref, o_ref, *, n_elem):
    # Rebuild the one-hot in-register (VPU slot has slack under the DMA):
    # HBM input traffic drops from 4*K B/row to 4 B/row.
    ids = ids_ref[...]                                    # (tile_m, 1) int32
    cols = jax.lax.broadcasted_iota(jnp.int32, (ids.shape[0], n_elem), 1)
    onehot = (cols == ids).astype(w_ref.dtype)
    o_ref[...] = jnp.dot(
        onehot, w_ref[...], preferred_element_type=jnp.float32
    ).astype(o_ref.dtype)


# --------------------------------------------------------------------------
# Wrappers
# --------------------------------------------------------------------------
def linear_node_embedding(node_attrs, weight, *, out_dtype=None):
    """y = node_attrs @ weight / sqrt(num_elements)  (general dense path).

    node_attrs: [num_nodes, num_elements]   (arbitrary scalar attrs)
    weight    : [num_elements, hidden]      (o3.Linear internal weights)
    """
    n_nodes, n_elem = node_attrs.shape
    n_elem_w, hidden = weight.shape
    assert n_elem == n_elem_w
    out_dtype = jnp.dtype(out_dtype) if out_dtype is not None else node_attrs.dtype

    # Fold the e3nn path normalization into the tiny weight (one-off, few KB).
    w = (weight * (1.0 / float(n_elem) ** 0.5)).astype(weight.dtype)

    granule = _sublane_granule(out_dtype)
    tile_m = _choose_tile_m(
        n_nodes, n_elem, jnp.dtype(node_attrs.dtype).itemsize,
        hidden, out_dtype.itemsize, granule,
    )
    grid_m = pl.cdiv(n_nodes, tile_m)

    flops = 2 * n_nodes * n_elem * hidden
    bytes_accessed = (
        n_nodes * n_elem * jnp.dtype(node_attrs.dtype).itemsize
        + n_elem * hidden * jnp.dtype(w.dtype).itemsize
        + n_nodes * hidden * out_dtype.itemsize
    )

    return pl.pallas_call(
        _dense_kernel,
        out_shape=jax.ShapeDtypeStruct((n_nodes, hidden), out_dtype),
        grid_spec=pltpu.PrefetchScalarGridSpec(
            num_scalar_prefetch=0,
            grid=(grid_m,),
            in_specs=[
                # node_attrs tile: (tile_m, n_elem); n_elem is the full last dim
                pl.BlockSpec((tile_m, n_elem), lambda i: (i, 0)),
                # weight: whole (tiny) matrix, same block every grid step
                pl.BlockSpec((n_elem, hidden), lambda i: (0, 0)),
            ],
            out_specs=pl.BlockSpec((tile_m, hidden), lambda i: (i, 0)),
        ),
        compiler_params=pltpu.CompilerParams(
            dimension_semantics=("parallel",),
            vmem_limit_bytes=_VMEM_LIMIT_BYTES,
        ),
        cost_estimate=pl.CostEstimate(
            flops=flops, transcendentals=0, bytes_accessed=bytes_accessed
        ),
    )(node_attrs, w)


def linear_node_embedding_from_ids(elem_ids, weight, *, out_dtype=jnp.float32):
    """One-hot fast path: y[i] = weight[elem_ids[i]] / sqrt(num_elements).

    elem_ids: [num_nodes] int   (element index per node)
    weight  : [num_elements, hidden]
    """
    (n_nodes,) = elem_ids.shape
    n_elem, hidden = weight.shape
    out_dtype = jnp.dtype(out_dtype)

    w = (weight * (1.0 / float(n_elem) ** 0.5)).astype(weight.dtype)
    ids = elem_ids.reshape(n_nodes, 1).astype(jnp.int32)

    granule = _sublane_granule(out_dtype)
    tile_m = _choose_tile_m(n_nodes, 1, 4, hidden, out_dtype.itemsize, granule)
    grid_m = pl.cdiv(n_nodes, tile_m)

    flops = 2 * n_nodes * n_elem * hidden
    bytes_accessed = (
        n_nodes * 4
        + n_elem * hidden * jnp.dtype(w.dtype).itemsize
        + n_nodes * hidden * out_dtype.itemsize
    )

    return pl.pallas_call(
        functools.partial(_onehot_kernel, n_elem=n_elem),
        out_shape=jax.ShapeDtypeStruct((n_nodes, hidden), out_dtype),
        grid_spec=pltpu.PrefetchScalarGridSpec(
            num_scalar_prefetch=0,
            grid=(grid_m,),
            in_specs=[
                pl.BlockSpec((tile_m, 1), lambda i: (i, 0)),
                pl.BlockSpec((n_elem, hidden), lambda i: (0, 0)),
            ],
            out_specs=pl.BlockSpec((tile_m, hidden), lambda i: (i, 0)),
        ),
        compiler_params=pltpu.CompilerParams(
            dimension_semantics=("parallel",),
            vmem_limit_bytes=_VMEM_LIMIT_BYTES,
        ),
        cost_estimate=pl.CostEstimate(
            flops=flops, transcendentals=0, bytes_accessed=bytes_accessed
        ),
    )(ids, w)


if __name__ == "__main__":
    key = jax.random.PRNGKey(0)
    k_x, k_w = jax.random.split(key)

    num_nodes = 1037     # ragged (not a multiple of 8) -> exercises masked writeback
    num_elements = 8     # irreps_in  = "8x0e"   (one-hot element attrs)
    hidden = 128         # irreps_out = "128x0e" (typical MACE)

    # One-hot node attributes, like MACE's node_attrs input.
    elem_ids = jax.random.randint(k_x, (num_nodes,), 0, num_elements, dtype=jnp.int32)
    node_attrs = jax.nn.one_hot(elem_ids, num_elements, dtype=jnp.float32)

    # o3.Linear internal weights: Normal(0, 1), shape (fan_in, fan_out).
    weight = jax.random.normal(k_w, (num_elements, hidden), dtype=jnp.float32)

    # Reference (e3nn path normalization = 1/sqrt(fan_in)).
    ref = (node_attrs @ weight) / jnp.sqrt(jnp.float32(num_elements))

    # 1) General dense path (exact o3.Linear semantics for arbitrary node_attrs).
    out = jax.block_until_ready(linear_node_embedding(node_attrs, weight))
    assert out.shape == (num_nodes, hidden)
    assert jnp.allclose(out, ref, atol=1e-5, rtol=1e-5)

    # 2) One-hot fast path (int32 element ids, in-kernel iota one-hot).
    out_ids = jax.block_until_ready(linear_node_embedding_from_ids(elem_ids, weight))
    assert out_ids.shape == (num_nodes, hidden)
    assert jnp.allclose(out_ids, ref, atol=1e-5, rtol=1e-5)

    # 3) Ragged hidden (non-multiple-of-128) + bf16 output, no output copy.
    out_bf16 = jax.block_until_ready(
        linear_node_embedding(node_attrs[:999], weight[:, :96], out_dtype=jnp.bfloat16)
    )
    ref_bf16 = ref[:999, :96]
    assert out_bf16.shape == (999, 96)
    assert out_bf16.dtype == jnp.bfloat16
    assert jnp.allclose(out_bf16.astype(jnp.float32), ref_bf16, atol=2e-2, rtol=2e-2)

    print("KERNEL_OK")
</pallas_src>

<mosaic_0001>
module attributes {stable_mosaic.version = 11 : i64} {
  func.func @_dense_kernel(%arg0: i32, %arg1: memref<1040x8xf32, #tpu.memory_space<vmem>>, %arg2: memref<8x128xf32, #tpu.memory_space<vmem>>, %arg3: memref<1040x128xf32, #tpu.memory_space<vmem>>) attributes {dimension_semantics = [#tpu.dimension_semantics<parallel>], iteration_bounds = array<i64: 1>, scalar_prefetch = 0 : i64, scratch_operands = 0 : i64, tpu.core_type = #tpu.core_type<tc>, window_params = [{transform_indices = @transform_0, window_bounds = array<i64: 1040, 8>}, {pipeline_mode = #tpu.pipeline_mode<synchronous>, transform_indices = @transform_1, window_bounds = array<i64: 8, 128>}, {transform_indices = @transform_2, window_bounds = array<i64: 1040, 128>}]} {
    %c0 = arith.constant 0 : index
    %c0_0 = arith.constant 0 : index
    %0 = vector.load %arg1[%c0, %c0_0] : memref<1040x8xf32, #tpu.memory_space<vmem>>, vector<1040x8xf32>
    %c0_1 = arith.constant 0 : index
    %c0_2 = arith.constant 0 : index
    %1 = vector.load %arg2[%c0_1, %c0_2] : memref<8x128xf32, #tpu.memory_space<vmem>>, vector<8x128xf32>
    %cst = arith.constant dense<0.000000e+00> : vector<1040x128xf32>
    %2 = tpu.matmul %0, %1, %cst {dimension_numbers = #tpu.dot_dimension_numbers<[1], [0], [0], [1], [0, 0, 1, 1], [], []>} : vector<1040x8xf32>, vector<8x128xf32>, vector<1040x128xf32> -> vector<1040x128xf32>
    %c0_3 = arith.constant 0 : index
    %c0_4 = arith.constant 0 : index
    %3 = vector.load %arg3[%c0_3, %c0_4] : memref<1040x128xf32, #tpu.memory_space<vmem>>, vector<1040x128xf32>
    tpu.vector_store %arg3[%c0_3, %c0_4], %2 {strides = array<i32>} : memref<1040x128xf32, #tpu.memory_space<vmem>>, vector<1040x128xf32>,
    return
  }
  func.func @transform_0(%arg0: i32) -> (i32, i32) {
    %c0_i32 = arith.constant 0 : i32
    %c0_i32_0 = arith.constant 0 : i32
    return %arg0, %c0_i32 : i32, i32
  }
  func.func @transform_1(%arg0: i32) -> (i32, i32) {
    %c0_i32 = arith.constant 0 : i32
    %c0_i32_0 = arith.constant 0 : i32
    %c0_i32_1 = arith.constant 0 : i32
    return %c0_i32, %c0_i32_0 : i32, i32
  }
  func.func @transform_2(%arg0: i32) -> (i32, i32) {
    %c0_i32 = arith.constant 0 : i32
    %c0_i32_0 = arith.constant 0 : i32
    return %arg0, %c0_i32 : i32, i32
  }
}

</mosaic_0001>

<llo_original>
// kernel: tpu_custom_call.1
$region0: #{tpu_custom_call.1}
  #allocation0 [shape = 'u32[]', space=smem, size = 0x4, offset = 0x4, fixed_abs, tag = 'smem constant byte address 0x4 - core index']
  #allocation1 [shape = 'u32[144,128]{1,0:T(1,128)}', space=vmem, size = 0x12000, scoped, tag = 'internal scratch']
  %s0 = inlined_call_operand.vmem [shape: f32[1037,8], index: 0, kind: input, shape index: {}]
  %s1 = inlined_call_operand.vmem [shape: f32[8,128], index: 1, kind: input, shape index: {}]
  %s2 = inlined_call_operand.hbm [shape: f32[1037,128], index: 2, kind: output, shape index: {}]
  %s3 = sld [smem:[#allocation0]]
  $region18: #{tpu_custom_call.1} parent=0
    _
  %s5 = ssub.s32 1, %s3
  %s6 = scalar_select 0, %s5, %s3
  $region1: #{tpu_custom_call.1} parent=0
    #allocation2 [shape = 'u8[532480]{0}', space=vmem, size = 0x82000, scoped, tag = 'output window, operand 0, single buffered']
    #allocation3 [shape = 's32[1]{0}', space=sflag, size = 0x4, scoped, tag = 'scoped memory for tpu_custom_call.1']
    %7 = vsyncpa [#allocation3], 0
    // Predicated region
    $region2: #{tpu_custom_call.1} parent=1 // pred_check
      _
    $region3: #{tpu_custom_call.1} parent=1 // pred_check_branch
      %9 = sbr.rel (0) target = $region5
    $region4: #{tpu_custom_call.1} parent=1 // pred_region
      _
    $region5: #{tpu_custom_call.1} parent=1 // pred_fallthru
      _
    // Predicated region
    $region6: #{tpu_custom_call.1} parent=1 // pred_check
      _
    $region7: #{tpu_custom_call.1} parent=1 // pred_check_branch
      %11 = sbr.rel (0) target = $region9
    $region8: #{tpu_custom_call.1} parent=1 // pred_region
      _
    $region9: #{tpu_custom_call.1} parent=1 // pred_fallthru
      _
    %v12 = vld [vmem:[%s0] sm:$0xff]
    %v13 = vld [vmem:[%s0 + $0x8] sm:$0xff]
    %v14 = vld [vmem:[%s0 + $0x10] sm:$0xff]
    %v15 = vld [vmem:[%s0 + $0x18] sm:$0xff]
    %v16 = vld [vmem:[%s0 + $0x20] sm:$0xff]
    %v17 = vld [vmem:[%s0 + $0x28] sm:$0xff]
    %v18 = vld [vmem:[%s0 + $0x30] sm:$0xff]
    %v19 = vld [vmem:[%s0 + $0x38] sm:$0xff]
    %v20 = vld [vmem:[%s0 + $0x40] sm:$0xff]
    %v21 = vld [vmem:[%s0 + $0x48] sm:$0xff]
    %v22 = vld [vmem:[%s0 + $0x50] sm:$0xff]
    %v23 = vld [vmem:[%s0 + $0x58] sm:$0xff]
    %v24 = vld [vmem:[%s0 + $0x60] sm:$0xff]
    %v25 = vld [vmem:[%s0 + $0x68] sm:$0xff]
    %v26 = vld [vmem:[%s0 + $0x70] sm:$0xff]
    %v27 = vld [vmem:[%s0 + $0x78] sm:$0xff]
    %v28 = vld [vmem:[%s0 + $0x80] sm:$0xff]
    %v29 = vld [vmem:[%s0 + $0x88] sm:$0xff]
    %v30 = vld [vmem:[%s0 + $0x90] sm:$0xff]
    %v31 = vld [vmem:[%s0 + $0x98] sm:$0xff]
    %v32 = vld [vmem:[%s0 + $0xa0] sm:$0xff]
    %v33 = vld [vmem:[%s0 + $0xa8] sm:$0xff]
    %v34 = vld [vmem:[%s0 + $0xb0] sm:$0xff]
    %v35 = vld [vmem:[%s0 + $0xb8] sm:$0xff]
    %v36 = vld [vmem:[%s0 + $0xc0] sm:$0xff]
    %v37 = vld [vmem:[%s0 + $0xc8] sm:$0xff]
    %v38 = vld [vmem:[%s0 + $0xd0] sm:$0xff]
    %v39 = vld [vmem:[%s0 + $0xd8] sm:$0xff]
    %v40 = vld [vmem:[%s0 + $0xe0] sm:$0xff]
    %v41 = vld [vmem:[%s0 + $0xe8] sm:$0xff]
    %v42 = vld [vmem:[%s0 + $0xf0] sm:$0xff]
    %v43 = vld [vmem:[%s0 + $0xf8] sm:$0xff]
    %v44 = vld [vmem:[%s0 + $0x100] sm:$0xff]
    %v45 = vld [vmem:[%s0 + $0x108] sm:$0xff]
    %v46 = vld [vmem:[%s0 + $0x110] sm:$0xff]
    %v47 = vld [vmem:[%s0 + $0x118] sm:$0xff]
    %v48 = vld [vmem:[%s0 + $0x120] sm:$0xff]
    %v49 = vld [vmem:[%s0 + $0x128] sm:$0xff]
    %v50 = vld [vmem:[%s0 + $0x130] sm:$0xff]
    %v51 = vld [vmem:[%s0 + $0x138] sm:$0xff]
    %v52 = vld [vmem:[%s0 + $0x140] sm:$0xff]
    %v53 = vld [vmem:[%s0 + $0x148] sm:$0xff]
    %v54 = vld [vmem:[%s0 + $0x150] sm:$0xff]
    %v55 = vld [vmem:[%s0 + $0x158] sm:$0xff]
    %v56 = vld [vmem:[%s0 + $0x160] sm:$0xff]
    %v57 = vld [vmem:[%s0 + $0x168] sm:$0xff]
    %v58 = vld [vmem:[%s0 + $0x170] sm:$0xff]
    %v59 = vld [vmem:[%s0 + $0x178] sm:$0xff]
    %v60 = vld [vmem:[%s0 + $0x180] sm:$0xff]
    %v61 = vld [vmem:[%s0 + $0x188] sm:$0xff]
    %v62 = vld [vmem:[%s0 + $0x190] sm:$0xff]
    %v63 = vld [vmem:[%s0 + $0x198] sm:$0xff]
    %v64 = vld [vmem:[%s0 + $0x1a0] sm:$0xff]
    %v65 = vld [vmem:[%s0 + $0x1a8] sm:$0xff]
    %v66 = vld [vmem:[%s0 + $0x1b0] sm:$0xff]
    %v67 = vld [vmem:[%s0 + $0x1b8] sm:$0xff]
    %v68 = vld [vmem:[%s0 + $0x1c0] sm:$0xff]
    %v69 = vld [vmem:[%s0 + $0x1c8] sm:$0xff]
    %v70 = vld [vmem:[%s0 + $0x1d0] sm:$0xff]
    %v71 = vld [vmem:[%s0 + $0x1d8] sm:$0xff]
    %v72 = vld [vmem:[%s0 + $0x1e0] sm:$0xff]
    %v73 = vld [vmem:[%s0 + $0x1e8] sm:$0xff]
    %v74 = vld [vmem:[%s0 + $0x1f0] sm:$0xff]
    %v75 = vld [vmem:[%s0 + $0x1f8] sm:$0xff]
    %v76 = vld [vmem:[%s0 + $0x200] sm:$0xff]
    %v77 = vld [vmem:[%s0 + $0x208] sm:$0xff]
    %v78 = vld [vmem:[%s0 + $0x210] sm:$0xff]
    %v79 = vld [vmem:[%s0 + $0x218] sm:$0xff]
    %v80 = vld [vmem:[%s0 + $0x220] sm:$0xff]
    %v81 = vld [vmem:[%s0 + $0x228] sm:$0xff]
    %v82 = vld [vmem:[%s0 + $0x230] sm:$0xff]
    %v83 = vld [vmem:[%s0 + $0x238] sm:$0xff]
    %v84 = vld [vmem:[%s0 + $0x240] sm:$0xff]
    %v85 = vld [vmem:[%s0 + $0x248] sm:$0xff]
    %v86 = vld [vmem:[%s0 + $0x250] sm:$0xff]
    %v87 = vld [vmem:[%s0 + $0x258] sm:$0xff]
    %v88 = vld [vmem:[%s0 + $0x260] sm:$0xff]
    %v89 = vld [vmem:[%s0 + $0x268] sm:$0xff]
    %v90 = vld [vmem:[%s0 + $0x270] sm:$0xff]
    %v91 = vld [vmem:[%s0 + $0x278] sm:$0xff]
    %v92 = vld [vmem:[%s0 + $0x280] sm:$0xff]
    %v93 = vld [vmem:[%s0 + $0x288] sm:$0xff]
    %v94 = vld [vmem:[%s0 + $0x290] sm:$0xff]
    %v95 = vld [vmem:[%s0 + $0x298] sm:$0xff]
    %v96 = vld [vmem:[%s0 + $0x2a0] sm:$0xff]
    %v97 = vld [vmem:[%s0 + $0x2a8] sm:$0xff]
    %v98 = vld [vmem:[%s0 + $0x2b0] sm:$0xff]
    %v99 = vld [vmem:[%s0 + $0x2b8] sm:$0xff]
    %v100 = vld [vmem:[%s0 + $0x2c0] sm:$0xff]
    %v101 = vld [vmem:[%s0 + $0x2c8] sm:$0xff]
    %v102 = vld [vmem:[%s0 + $0x2d0] sm:$0xff]
    %v103 = vld [vmem:[%s0 + $0x2d8] sm:$0xff]
    %v104 = vld [vmem:[%s0 + $0x2e0] sm:$0xff]
    %v105 = vld [vmem:[%s0 + $0x2e8] sm:$0xff]
    %v106 = vld [vmem:[%s0 + $0x2f0] sm:$0xff]
    %v107 = vld [vmem:[%s0 + $0x2f8] sm:$0xff]
    %v108 = vld [vmem:[%s0 + $0x300] sm:$0xff]
    %v109 = vld [vmem:[%s0 + $0x308] sm:$0xff]
    %v110 = vld [vmem:[%s0 + $0x310] sm:$0xff]
    %v111 = vld [vmem:[%s0 + $0x318] sm:$0xff]
    %v112 = vld [vmem:[%s0 + $0x320] sm:$0xff]
    %v113 = vld [vmem:[%s0 + $0x328] sm:$0xff]
    %v114 = vld [vmem:[%s0 + $0x330] sm:$0xff]
    %v115 = vld [vmem:[%s0 + $0x338] sm:$0xff]
    %v116 = vld [vmem:[%s0 + $0x340] sm:$0xff]
    %v117 = vld [vmem:[%s0 + $0x348] sm:$0xff]
    %v118 = vld [vmem:[%s0 + $0x350] sm:$0xff]
    %v119 = vld [vmem:[%s0 + $0x358] sm:$0xff]
    %v120 = vld [vmem:[%s0 + $0x360] sm:$0xff]
    %v121 = vld [vmem:[%s0 + $0x368] sm:$0xff]
    %v122 = vld [vmem:[%s0 + $0x370] sm:$0xff]
    %v123 = vld [vmem:[%s0 + $0x378] sm:$0xff]
    %v124 = vld [vmem:[%s0 + $0x380] sm:$0xff]
    %v125 = vld [vmem:[%s0 + $0x388] sm:$0xff]
    %v126 = vld [vmem:[%s0 + $0x390] sm:$0xff]
    %v127 = vld [vmem:[%s0 + $0x398] sm:$0xff]
    %v128 = vld [vmem:[%s0 + $0x3a0] sm:$0xff]
    %v129 = vld [vmem:[%s0 + $0x3a8] sm:$0xff]
    %v130 = vld [vmem:[%s0 + $0x3b0] sm:$0xff]
    %v131 = vld [vmem:[%s0 + $0x3b8] sm:$0xff]
    %v132 = vld [vmem:[%s0 + $0x3c0] sm:$0xff]
    %v133 = vld [vmem:[%s0 + $0x3c8] sm:$0xff]
    %v134 = vld [vmem:[%s0 + $0x3d0] sm:$0xff]
    %v135 = vld [vmem:[%s0 + $0x3d8] sm:$0xff]
    %v136 = vld [vmem:[%s0 + $0x3e0] sm:$0xff]
    %v137 = vld [vmem:[%s0 + $0x3e8] sm:$0xff]
    %v138 = vld [vmem:[%s0 + $0x3f0] sm:$0xff]
    %v139 = vld [vmem:[%s0 + $0x3f8] sm:$0xff]
    %v140 = vld [vmem:[%s0 + $0x400] sm:$0xff]
    %v141 = vld [vmem:[%s0 + $0x408] sm:$0xff]
    %v142 = vld [vmem:[%s1] sm:$0xff]
    %vm143 = vcmask 64512
    %v145 = vsel %vm143, %v12, 0
    %v148 = vsel %vm143, %v13, 0
    %v151 = vsel %vm143, %v14, 0
    %v154 = vsel %vm143, %v15, 0
    %v157 = vsel %vm143, %v16, 0
    %v160 = vsel %vm143, %v17, 0
    %v163 = vsel %vm143, %v18, 0
    %v166 = vsel %vm143, %v19, 0
    %v169 = vsel %vm143, %v20, 0
    %v172 = vsel %vm143, %v21, 0
    %v175 = vsel %vm143, %v22, 0
    %v178 = vsel %vm143, %v23, 0
    %v181 = vsel %vm143, %v24, 0
    %v184 = vsel %vm143, %v25, 0
    %v187 = vsel %vm143, %v26, 0
    %v190 = vsel %vm143, %v27, 0
    %v193 = vsel %vm143, %v28, 0
    %v196 = vsel %vm143, %v29, 0
    %v199 = vsel %vm143, %v30, 0
    %v202 = vsel %vm143, %v31, 0
    %v205 = vsel %vm143, %v32, 0
    %v208 = vsel %vm143, %v33, 0
    %v211 = vsel %vm143, %v34, 0
    %v214 = vsel %vm143, %v35, 0
    %v217 = vsel %vm143, %v36, 0
    %v220 = vsel %vm143, %v37, 0
    %v223 = vsel %vm143, %v38, 0
    %v226 = vsel %vm143, %v39, 0
    %v229 = vsel %vm143, %v40, 0
    %v232 = vsel %vm143, %v41, 0
    %v235 = vsel %vm143, %v42, 0
    %v238 = vsel %vm143, %v43, 0
    %v241 = vsel %vm143, %v44, 0
    %v244 = vsel %vm143, %v45, 0
    %v247 = vsel %vm143, %v46, 0
    %v250 = vsel %vm143, %v47, 0
    %v253 = vsel %vm143, %v48, 0
    %v256 = vsel %vm143, %v49, 0
    %v259 = vsel %vm143, %v50, 0
    %v262 = vsel %vm143, %v51, 0
    %v265 = vsel %vm143, %v52, 0
    %v268 = vsel %vm143, %v53, 0
    %v271 = vsel %vm143, %v54, 0
    %v274 = vsel %vm143, %v55, 0
    %v277 = vsel %vm143, %v56, 0
    %v280 = vsel %vm143, %v57, 0
    %v283 = vsel %vm143, %v58, 0
    %v286 = vsel %vm143, %v59, 0
    %v289 = vsel %vm143, %v60, 0
    %v292 = vsel %vm143, %v61, 0
    %v295 = vsel %vm143, %v62, 0
    %v298 = vsel %vm143, %v63, 0
    %v301 = vsel %vm143, %v64, 0
    %v304 = vsel %vm143, %v65, 0
    %v307 = vsel %vm143, %v66, 0
    %v310 = vsel %vm143, %v67, 0
    %v313 = vsel %vm143, %v68, 0
    %v316 = vsel %vm143, %v69, 0
    %v319 = vsel %vm143, %v70, 0
    %v322 = vsel %vm143, %v71, 0
    %v325 = vsel %vm143, %v72, 0
    %v328 = vsel %vm143, %v73, 0
    %v331 = vsel %vm143, %v74, 0
    %v334 = vsel %vm143, %v75, 0
    %v337 = vsel %vm143, %v76, 0
    %v340 = vsel %vm143, %v77, 0
    %v343 = vsel %vm143, %v78, 0
    %v346 = vsel %vm143, %v79, 0
    %v349 = vsel %vm143, %v80, 0
    %v352 = vsel %vm143, %v81, 0
    %v355 = vsel %vm143, %v82, 0
    %v358 = vsel %vm143, %v83, 0
    %v361 = vsel %vm143, %v84, 0
    %v364 = vsel %vm143, %v85, 0
    %v367 = vsel %vm143, %v86, 0
    %v370 = vsel %vm143, %v87, 0
    %v373 = vsel %vm143, %v88, 0
    %v376 = vsel %vm143, %v89, 0
    %v379 = vsel %vm143, %v90, 0
    %v382 = vsel %vm143, %v91, 0
    %v385 = vsel %vm143, %v92, 0
    %v388 = vsel %vm143, %v93, 0
    %v391 = vsel %vm143, %v94, 0
    %v394 = vsel %vm143, %v95, 0
    %v397 = vsel %vm143, %v96, 0
    %v400 = vsel %vm143, %v97, 0
    %v403 = vsel %vm143, %v98, 0
    %v406 = vsel %vm143, %v99, 0
    %v409 = vsel %vm143, %v100, 0
    %v412 = vsel %vm143, %v101, 0
    %v415 = vsel %vm143, %v102, 0
    %v418 = vsel %vm143, %v103, 0
    %v421 = vsel %vm143, %v104, 0
    %v424 = vsel %vm143, %v105, 0
    %v427 = vsel %vm143, %v106, 0
    %v430 = vsel %vm143, %v107, 0
    %v433 = vsel %vm143, %v108, 0
    %v436 = vsel %vm143, %v109, 0
    %v439 = vsel %vm143, %v110, 0
    %v442 = vsel %vm143, %v111, 0
    %v445 = vsel %vm143, %v112, 0
    %v448 = vsel %vm143, %v113, 0
    %v451 = vsel %vm143, %v114, 0
    %v454 = vsel %vm143, %v115, 0
    %v457 = vsel %vm143, %v116, 0
    %v460 = vsel %vm143, %v117, 0
    %v463 = vsel %vm143, %v118, 0
    %v466 = vsel %vm143, %v119, 0
    %v469 = vsel %vm143, %v120, 0
    %v472 = vsel %vm143, %v121, 0
    %v475 = vsel %vm143, %v122, 0
    %v478 = vsel %vm143, %v123, 0
    %v481 = vsel %vm143, %v124, 0
    %v484 = vsel %vm143, %v125, 0
    %v487 = vsel %vm143, %v126, 0
    %v490 = vsel %vm143, %v127, 0
    %v493 = vsel %vm143, %v128, 0
    %v496 = vsel %vm143, %v129, 0
    %v499 = vsel %vm143, %v130, 0
    %v502 = vsel %vm143, %v131, 0
    %v505 = vsel %vm143, %v132, 0
    %v508 = vsel %vm143, %v133, 0
    %v511 = vsel %vm143, %v134, 0
    %v514 = vsel %vm143, %v135, 0
    %v517 = vsel %vm143, %v136, 0
    %v520 = vsel %vm143, %v137, 0
    %v523 = vsel %vm143, %v138, 0
    %v526 = vsel %vm143, %v139, 0
    %v529 = vsel %vm143, %v140, 0
    %v532 = vsel %vm143, %v141, 0
    %534 = vmatprep.subr.mxu0 0.0
    %535 = vmatpush1.msra.mxu0 %v142
    %536 = vmatprep.subr.mxu0 0.0
    %537 = vmatpush1.msra.mxu0 0.0
    %538 = vmatprep.subr.mxu0 0.0
    %539 = vmatpush1.msra.mxu0 0.0
    %540 = vmatprep.subr.mxu0 0.0
    %541 = vmatpush1.msra.mxu0 0.0
    %542 = vmatprep.subr.mxu0 0.0
    %543 = vmatpush1.msra.mxu0 0.0
    %544 = vmatprep.subr.mxu0 0.0
    %545 = vmatpush1.msra.mxu0 0.0
    %546 = vmatprep.subr.mxu0 0.0
    %547 = vmatpush1.msra.mxu0 0.0
    %548 = vmatprep.subr.mxu0 0.0
    %549 = vmatpush1.msra.mxu0 0.0
    %550 = vmatprep.subr.mxu0 0.0
    %551 = vmatpush1.msra.mxu0 0.0
    %552 = vmatprep.subr.mxu0 0.0
    %553 = vmatpush1.msra.mxu0 0.0
    %554 = vmatprep.subr.mxu0 0.0
    %555 = vmatpush1.msra.mxu0 0.0
    %556 = vmatprep.subr.mxu0 0.0
    %557 = vmatpush1.msra.mxu0 0.0
    %558 = vmatprep.subr.mxu0 0.0
    %559 = vmatpush1.msra.mxu0 0.0
    %560 = vmatprep.subr.mxu0 0.0
    %561 = vmatpush1.msra.mxu0 0.0
    %562 = vmatprep.subr.mxu0 0.0
    %563 = vmatpush1.msra.mxu0 0.0
    %564 = vmatprep.subr.mxu0 0.0
    %565 = vmatpush1.msra.mxu0 0.0
    %566 = vmatprep.subr.mxu0 0.0
    %567 = vmatpush1.msra.mxu0 0.0
    %568 = vmatprep.subr.mxu0 0.0
    %569 = vmatpush1.msra.mxu0 0.0
    %570 = vmatprep.subr.mxu0 0.0
    %571 = vmatpush1.msra.mxu0 0.0
    %572 = vmatprep.subr.mxu0 0.0
    %573 = vmatpush1.msra.mxu0 0.0
    %574 = vmatprep.subr.mxu0 0.0
    %575 = vmatpush1.msra.mxu0 0.0
    %576 = vmatprep.subr.mxu0 0.0
    %577 = vmatpush1.msra.mxu0 0.0
    %578 = vmatprep.subr.mxu0 0.0
    %579 = vmatpush1.msra.mxu0 0.0
    %580 = vmatprep.subr.mxu0 0.0
    %581 = vmatpush1.msra.mxu0 0.0
    %582 = vmatprep.subr.mxu0 0.0
    %583 = vmatpush1.msra.mxu0 0.0
    %584 = vmatprep.subr.mxu0 0.0
    %585 = vmatpush1.msra.mxu0 0.0
    %586 = vmatprep.subr.mxu0 0.0
    %587 = vmatpush1.msra.mxu0 0.0
    %588 = vmatprep.subr.mxu0 0.0
    %589 = vmatpush1.msra.mxu0 0.0
    %590 = vmatprep.subr.mxu0 0.0
    %591 = vmatpush1.msra.mxu0 0.0
    %592 = vmatprep.subr.mxu0 0.0
    %593 = vmatpush1.msra.mxu0 0.0
    %594 = vmatprep.subr.mxu0 0.0
    %595 = vmatpush1.msra.mxu0 0.0
    %596 = vmatprep.subr.mxu0 0.0
    %597 = vmatpush1.msra.mxu0 0.0
    %598 = vmatprep.mubr.f32.mxu0 0.0
    %599 = vmatmul.mubr.f32.gmra.mrb[0].mxu0 %v145
    %v600 = vpop.f32.mrb[0].mxu0
    %v601 = vadd.f32 0.0, %v600
    %v602 = vpop.f32.mrb[0].mxu0
    %603 = vmatprep.mubr.f32.mxu0 0.0
    %604 = vmatmul.mubr.f32.gmra.mrb[0].mxu0 %v148
    %v605 = vpop.f32.mrb[0].mxu0
    %v606 = vadd.f32 0.0, %v605
    %v607 = vpop.f32.mrb[0].mxu0
    %608 = vmatprep.mubr.f32.mxu0 0.0
    %609 = vmatmul.mubr.f32.gmra.mrb[0].mxu0 %v151
    %v610 = vpop.f32.mrb[0].mxu0
    %v611 = vadd.f32 0.0, %v610
    %v612 = vpop.f32.mrb[0].mxu0
    %613 = vmatprep.mubr.f32.mxu0 0.0
    %614 = vmatmul.mubr.f32.gmra.mrb[0].mxu0 %v154
    %v615 = vpop.f32.mrb[0].mxu0
    %v616 = vadd.f32 0.0, %v615
    %v617 = vpop.f32.mrb[0].mxu0
    %618 = vmatprep.mubr.f32.mxu0 0.0
    %619 = vmatmul.mubr.f32.gmra.mrb[0].mxu0 %v157
    %v620 = vpop.f32.mrb[0].mxu0
    %v621 = vadd.f32 0.0, %v620
    %v622 = vpop.f32.mrb[0].mxu0
    %623 = vmatprep.mubr.f32.mxu0 0.0
    %624 = vmatmul.mubr.f32.gmra.mrb[0].mxu0 %v160
    %v625 = vpop.f32.mrb[0].mxu0
    %v626 = vadd.f32 0.0, %v625
    %v627 = vpop.f32.mrb[0].mxu0
    %628 = vmatprep.mubr.f32.mxu0 0.0
    %629 = vmatmul.mubr.f32.gmra.mrb[0].mxu0 %v163
    %v630 = vpop.f32.mrb[0].mxu0
    %v631 = vadd.f32 0.0, %v630
    %v632 = vpop.f32.mrb[0].mxu0
    %633 = vmatprep.mubr.f32.mxu0 0.0
    %634 = vmatmul.mubr.f32.gmra.mrb[0].mxu0 %v166
    %v635 = vpop.f32.mrb[0].mxu0
    %v636 = vadd.f32 0.0, %v635
    %v637 = vpop.f32.mrb[0].mxu0
    %638 = vmatprep.mubr.f32.mxu0 0.0
    %639 = vmatmul.mubr.f32.gmra.mrb[0].mxu0 %v169
    %v640 = vpop.f32.mrb[0].mxu0
    %v641 = vadd.f32 0.0, %v640
    %v642 = vpop.f32.mrb[0].mxu0
    %643 = vmatprep.mubr.f32.mxu0 0.0
    %644 = vmatmul.mubr.f32.gmra.mrb[0].mxu0 %v172
    %v645 = vpop.f32.mrb[0].mxu0
    %v646 = vadd.f32 0.0, %v645
    %v647 = vpop.f32.mrb[0].mxu0
    %648 = vmatprep.mubr.f32.mxu0 0.0
    %649 = vmatmul.mubr.f32.gmra.mrb[0].mxu0 %v175
    %v650 = vpop.f32.mrb[0].mxu0
    %v651 = vadd.f32 0.0, %v650
    %v652 = vpop.f32.mrb[0].mxu0
    %653 = vmatprep.mubr.f32.mxu0 0.0
    %654 = vmatmul.mubr.f32.gmra.mrb[0].mxu0 %v178
    %v655 = vpop.f32.mrb[0].mxu0
    %v656 = vadd.f32 0.0, %v655
    %v657 = vpop.f32.mrb[0].mxu0
    %658 = vmatprep.mubr.f32.mxu0 0.0
    %659 = vmatmul.mubr.f32.gmra.mrb[0].mxu0 %v181
    %v660 = vpop.f32.mrb[0].mxu0
    %v661 = vadd.f32 0.0, %v660
    %v662 = vpop.f32.mrb[0].mxu0
    %663 = vmatprep.mubr.f32.mxu0 0.0
    %664 = vmatmul.mubr.f32.gmra.mrb[0].mxu0 %v184
    %v665 = vpop.f32.mrb[0].mxu0
    %v666 = vadd.f32 0.0, %v665
    %v667 = vpop.f32.mrb[0].mxu0
    %668 = vmatprep.mubr.f32.mxu0 0.0
    %669 = vmatmul.mubr.f32.gmra.mrb[0].mxu0 %v187
    %v670 = vpop.f32.mrb[0].mxu0
    %v671 = vadd.f32 0.0, %v670
    %v672 = vpop.f32.mrb[0].mxu0
    %673 = vmatprep.mubr.f32.mxu0 0.0
    %674 = vmatmul.mubr.f32.gmra.mrb[0].mxu0 %v190
    %v675 = vpop.f32.mrb[0].mxu0
    %v676 = vadd.f32 0.0, %v675
    %v677 = vpop.f32.mrb[0].mxu0
    %678 = vmatprep.mubr.f32.mxu0 0.0
    %679 = vmatmul.mubr.f32.gmra.mrb[0].mxu0 %v193
    %v680 = vpop.f32.mrb[0].mxu0
    %v681 = vadd.f32 0.0, %v680
    %v682 = vpop.f32.mrb[0].mxu0
    %683 = vmatprep.mubr.f32.mxu0 0.0
    %684 = vmatmul.mubr.f32.gmra.mrb[0].mxu0 %v196
    %v685 = vpop.f32.mrb[0].mxu0
    %v686 = vadd.f32 0.0, %v685
    %v687 = vpop.f32.mrb[0].mxu0
    %688 = vmatprep.mubr.f32.mxu0 0.0
    %689 = vmatmul.mubr.f32.gmra.mrb[0].mxu0 %v199
    %v690 = vpop.f32.mrb[0].mxu0
    %v691 = vadd.f32 0.0, %v690
    %v692 = vpop.f32.mrb[0].mxu0
    %693 = vmatprep.mubr.f32.mxu0 0.0
    %694 = vmatmul.mubr.f32.gmra.mrb[0].mxu0 %v202
    %v695 = vpop.f32.mrb[0].mxu0
    %v696 = vadd.f32 0.0, %v695
    %v697 = vpop.f32.mrb[0].mxu0
    %698 = vmatprep.mubr.f32.mxu0 0.0
    %699 = vmatmul.mubr.f32.gmra.mrb[0].mxu0 %v205
    %v700 = vpop.f32.mrb[0].mxu0
    %v701 = vadd.f32 0.0, %v700
    %v702 = vpop.f32.mrb[0].mxu0
    %703 = vmatprep.mubr.f32.mxu0 0.0
    %704 = vmatmul.mubr.f32.gmra.mrb[0].mxu0 %v208
    %v705 = vpop.f32.mrb[0].mxu0
    %v706 = vadd.f32 0.0, %v705
    %v707 = vpop.f32.mrb[0].mxu0
    %708 = vmatprep.mubr.f32.mxu0 0.0
    %709 = vmatmul.mubr.f32.gmra.mrb[0].mxu0 %v211
    %v710 = vpop.f32.mrb[0].mxu0
    %v711 = vadd.f32 0.0, %v710
    %v712 = vpop.f32.mrb[0].mxu0
    %713 = vmatprep.mubr.f32.mxu0 0.0
    %714 = vmatmul.mubr.f32.gmra.mrb[0].mxu0 %v214
    %v715 = vpop.f32.mrb[0].mxu0
    %v716 = vadd.f32 0.0, %v715
    %v717 = vpop.f32.mrb[0].mxu0
    %718 = vmatprep.mubr.f32.mxu0 0.0
    %719 = vmatmul.mubr.f32.gmra.mrb[0].mxu0 %v217
    %v720 = vpop.f32.mrb[0].mxu0
    %v721 = vadd.f32 0.0, %v720
    %v722 = vpop.f32.mrb[0].mxu0
    %723 = vmatprep.mubr.f32.mxu0 0.0
    %724 = vmatmul.mubr.f32.gmra.mrb[0].mxu0 %v220
    %v725 = vpop.f32.mrb[0].mxu0
    %v726 = vadd.f32 0.0, %v725
    %v727 = vpop.f32.mrb[0].mxu0
    %728 = vmatprep.mubr.f32.mxu0 0.0
    %729 = vmatmul.mubr.f32.gmra.mrb[0].mxu0 %v223
    %v730 = vpop.f32.mrb[0].mxu0
    %v731 = vadd.f32 0.0, %v730
    %v732 = vpop.f32.mrb[0].mxu0
    %733 = vmatprep.mubr.f32.mxu0 0.0
    %734 = vmatmul.mubr.f32.gmra.mrb[0].mxu0 %v226
    %v735 = vpop.f32.mrb[0].mxu0
    %v736 = vadd.f32 0.0, %v735
    %v737 = vpop.f32.mrb[0].mxu0
    %738 = vmatprep.mubr.f32.mxu0 0.0
    %739 = vmatmul.mubr.f32.gmra.mrb[0].mxu0 %v229
    %v740 = vpop.f32.mrb[0].mxu0
    %v741 = vadd.f32 0.0, %v740
    %v742 = vpop.f32.mrb[0].mxu0
    %743 = vmatprep.mubr.f32.mxu0 0.0
    %744 = vmatmul.mubr.f32.gmra.mrb[0].mxu0 %v232
    %v745 = vpop.f32.mrb[0].mxu0
    %v746 = vadd.f32 0.0, %v745
    %v747 = vpop.f32.mrb[0].mxu0
    %748 = vmatprep.mubr.f32.mxu0 0.0
    %749 = vmatmul.mubr.f32.gmra.mrb[0].mxu0 %v235
    %v750 = vpop.f32.mrb[0].mxu0
    %v751 = vadd.f32 0.0, %v750
    %v752 = vpop.f32.mrb[0].mxu0
    %753 = vmatprep.mubr.f32.mxu0 0.0
    %754 = vmatmul.mubr.f32.gmra.mrb[0].mxu0 %v238
    %v755 = vpop.f32.mrb[0].mxu0
    %v756 = vadd.f32 0.0, %v755
    %v757 = vpop.f32.mrb[0].mxu0
    %758 = vmatprep.mubr.f32.mxu0 0.0
    %759 = vmatmul.mubr.f32.gmra.mrb[0].mxu0 %v241
    %v760 = vpop.f32.mrb[0].mxu0
    %v761 = vadd.f32 0.0, %v760
    %v762 = vpop.f32.mrb[0].mxu0
    %763 = vmatprep.mubr.f32.mxu0 0.0
    %764 = vmatmul.mubr.f32.gmra.mrb[0].mxu0 %v244
    %v765 = vpop.f32.mrb[0].mxu0
    %v766 = vadd.f32 0.0, %v765
    %v767 = vpop.f32.mrb[0].mxu0
    %768 = vmatprep.mubr.f32.mxu0 0.0
    %769 = vmatmul.mubr.f32.gmra.mrb[0].mxu0 %v247
    %v770 = vpop.f32.mrb[0].mxu0
    %v771 = vadd.f32 0.0, %v770
    %v772 = vpop.f32.mrb[0].mxu0
    %773 = vmatprep.mubr.f32.mxu0 0.0
    %774 = vmatmul.mubr.f32.gmra.mrb[0].mxu0 %v250
    %v775 = vpop.f32.mrb[0].mxu0
    %v776 = vadd.f32 0.0, %v775
    %v777 = vpop.f32.mrb[0].mxu0
    %778 = vmatprep.mubr.f32.mxu0 0.0
    %779 = vmatmul.mubr.f32.gmra.mrb[0].mxu0 %v253
    %v780 = vpop.f32.mrb[0].mxu0
    %v781 = vadd.f32 0.0, %v780
    %v782 = vpop.f32.mrb[0].mxu0
    %783 = vmatprep.mubr.f32.mxu0 0.0
    %784 = vmatmul.mubr.f32.gmra.mrb[0].mxu0 %v256
    %v785 = vpop.f32.mrb[0].mxu0
    %v786 = vadd.f32 0.0, %v785
    %v787 = vpop.f32.mrb[0].mxu0
    %788 = vmatprep.mubr.f32.mxu0 0.0
    %789 = vmatmul.mubr.f32.gmra.mrb[0].mxu0 %v259
    %v790 = vpop.f32.mrb[0].mxu0
    %v791 = vadd.f32 0.0, %v790
    %v792 = vpop.f32.mrb[0].mxu0
    %793 = vmatprep.mubr.f32.mxu0 0.0
    %794 = vmatmul.mubr.f32.gmra.mrb[0].mxu0 %v262
    %v795 = vpop.f32.mrb[0].mxu0
    %v796 = vadd.f32 0.0, %v795
    %v797 = vpop.f32.mrb[0].mxu0
    %798 = vmatprep.mubr.f32.mxu0 0.0
    %799 = vmatmul.mubr.f32.gmra.mrb[0].mxu0 %v265
    %v800 = vpop.f32.mrb[0].mxu0
    %v801 = vadd.f32 0.0, %v800
    %v802 = vpop.f32.mrb[0].mxu0
    %803 = vmatprep.mubr.f32.mxu0 0.0
    %804 = vmatmul.mubr.f32.gmra.mrb[0].mxu0 %v268
    %v805 = vpop.f32.mrb[0].mxu0
    %v806 = vadd.f32 0.0, %v805
    %v807 = vpop.f32.mrb[0].mxu0
    %808 = vmatprep.mubr.f32.mxu0 0.0
    %809 = vmatmul.mubr.f32.gmra.mrb[0].mxu0 %v271
    %v810 = vpop.f32.mrb[0].mxu0
    %v811 = vadd.f32 0.0, %v810
    %v812 = vpop.f32.mrb[0].mxu0
    %813 = vmatprep.mubr.f32.mxu0 0.0
    %814 = vmatmul.mubr.f32.gmra.mrb[0].mxu0 %v274
    %v815 = vpop.f32.mrb[0].mxu0
    %v816 = vadd.f32 0.0, %v815
    %v817 = vpop.f32.mrb[0].mxu0
    %818 = vmatprep.mubr.f32.mxu0 0.0
    %819 = vmatmul.mubr.f32.gmra.mrb[0].mxu0 %v277
    %v820 = vpop.f32.mrb[0].mxu0
    %v821 = vadd.f32 0.0, %v820
    %v822 = vpop.f32.mrb[0].mxu0
    %823 = vmatprep.mubr.f32.mxu0 0.0
    %824 = vmatmul.mubr.f32.gmra.mrb[0].mxu0 %v280
    %v825 = vpop.f32.mrb[0].mxu0
    %v826 = vadd.f32 0.0, %v825
    %v827 = vpop.f32.mrb[0].mxu0
    %828 = vmatprep.mubr.f32.mxu0 0.0
    %829 = vmatmul.mubr.f32.gmra.mrb[0].mxu0 %v283
    %v830 = vpop.f32.mrb[0].mxu0
    %v831 = vadd.f32 0.0, %v830
    %v832 = vpop.f32.mrb[0].mxu0
    %833 = vmatprep.mubr.f32.mxu0 0.0
    %834 = vmatmul.mubr.f32.gmra.mrb[0].mxu0 %v286
    %v835 = vpop.f32.mrb[0].mxu0
    %v836 = vadd.f32 0.0, %v835
    %v837 = vpop.f32.mrb[0].mxu0
    %838 = vmatprep.mubr.f32.mxu0 0.0
    %839 = vmatmul.mubr.f32.gmra.mrb[0].mxu0 %v289
    %v840 = vpop.f32.mrb[0].mxu0
    %v841 = vadd.f32 0.0, %v840
    %v842 = vpop.f32.mrb[0].mxu0
    %843 = vmatprep.mubr.f32.mxu0 0.0
    %844 = vmatmul.mubr.f32.gmra.mrb[0].mxu0 %v292
    %v845 = vpop.f32.mrb[0].mxu0
    %v846 = vadd.f32 0.0, %v845
    %v847 = vpop.f32.mrb[0].mxu0
    %848 = vmatprep.mubr.f32.mxu0 0.0
    %849 = vmatmul.mubr.f32.gmra.mrb[0].mxu0 %v295
    %v850 = vpop.f32.mrb[0].mxu0
    %v851 = vadd.f32 0.0, %v850
    %v852 = vpop.f32.mrb[0].mxu0
    %853 = vmatprep.mubr.f32.mxu0 0.0
    %854 = vmatmul.mubr.f32.gmra.mrb[0].mxu0 %v298
    %v855 = vpop.f32.mrb[0].mxu0
    %v856 = vadd.f32 0.0, %v855
    %v857 = vpop.f32.mrb[0].mxu0
    %858 = vmatprep.mubr.f32.mxu0 0.0
    %859 = vmatmul.mubr.f32.gmra.mrb[0].mxu0 %v301
    %v860 = vpop.f32.mrb[0].mxu0
    %v861 = vadd.f32 0.0, %v860
    %v862 = vpop.f32.mrb[0].mxu0
    %863 = vmatprep.mubr.f32.mxu0 0.0
    %864 = vmatmul.mubr.f32.gmra.mrb[0].mxu0 %v304
    %v865 = vpop.f32.mrb[0].mxu0
    %v866 = vadd.f32 0.0, %v865
    %v867 = vpop.f32.mrb[0].mxu0
    %868 = vmatprep.mubr.f32.mxu0 0.0
    %869 = vmatmul.mubr.f32.gmra.mrb[0].mxu0 %v307
    %v870 = vpop.f32.mrb[0].mxu0
    %v871 = vadd.f32 0.0, %v870
    %v872 = vpop.f32.mrb[0].mxu0
    %873 = vmatprep.mubr.f32.mxu0 0.0
    %874 = vmatmul.mubr.f32.gmra.mrb[0].mxu0 %v310
    %v875 = vpop.f32.mrb[0].mxu0
    %v876 = vadd.f32 0.0, %v875
    %v877 = vpop.f32.mrb[0].mxu0
    %878 = vmatprep.mubr.f32.mxu0 0.0
    %879 = vmatmul.mubr.f32.gmra.mrb[0].mxu0 %v313
    %v880 = vpop.f32.mrb[0].mxu0
    %v881 = vadd.f32 0.0, %v880
    %v882 = vpop.f32.mrb[0].mxu0
    %883 = vmatprep.mubr.f32.mxu0 0.0
    %884 = vmatmul.mubr.f32.gmra.mrb[0].mxu0 %v316
    %v885 = vpop.f32.mrb[0].mxu0
    %v886 = vadd.f32 0.0, %v885
    %v887 = vpop.f32.mrb[0].mxu0
    %888 = vmatprep.mubr.f32.mxu0 0.0
    %889 = vmatmul.mubr.f32.gmra.mrb[0].mxu0 %v319
    %v890 = vpop.f32.mrb[0].mxu0
    %v891 = vadd.f32 0.0, %v890
    %v892 = vpop.f32.mrb[0].mxu0
    %893 = vmatprep.mubr.f32.mxu0 0.0
    %894 = vmatmul.mubr.f32.gmra.mrb[0].mxu0 %v322
    %v895 = vpop.f32.mrb[0].mxu0
    %v896 = vadd.f32 0.0, %v895
    %v897 = vpop.f32.mrb[0].mxu0
    %898 = vmatprep.mubr.f32.mxu0 0.0
    %899 = vmatmul.mubr.f32.gmra.mrb[0].mxu0 %v325
    %v900 = vpop.f32.mrb[0].mxu0
    %v901 = vadd.f32 0.0, %v900
    %v902 = vpop.f32.mrb[0].mxu0
    %903 = vmatprep.mubr.f32.mxu0 0.0
    %904 = vmatmul.mubr.f32.gmra.mrb[0].mxu0 %v328
    %v905 = vpop.f32.mrb[0].mxu0
    %v906 = vadd.f32 0.0, %v905
    %v907 = vpop.f32.mrb[0].mxu0
    %908 = vmatprep.mubr.f32.mxu0 0.0
    %909 = vmatmul.mubr.f32.gmra.mrb[0].mxu0 %v331
    %v910 = vpop.f32.mrb[0].mxu0
    %v911 = vadd.f32 0.0, %v910
    %v912 = vpop.f32.mrb[0].mxu0
    %913 = vmatprep.mubr.f32.mxu0 0.0
    %914 = vmatmul.mubr.f32.gmra.mrb[0].mxu0 %v334
    %v915 = vpop.f32.mrb[0].mxu0
    %v916 = vadd.f32 0.0, %v915
    %v917 = vpop.f32.mrb[0].mxu0
    %918 = vmatprep.mubr.f32.mxu0 0.0
    %919 = vmatmul.mubr.f32.gmra.mrb[0].mxu0 %v337
    %v920 = vpop.f32.mrb[0].mxu0
    %v921 = vadd.f32 0.0, %v920
    %v922 = vpop.f32.mrb[0].mxu0
    %923 = vmatprep.mubr.f32.mxu0 0.0
    %924 = vmatmul.mubr.f32.gmra.mrb[0].mxu0 %v340
    %v925 = vpop.f32.mrb[0].mxu0
    %v926 = vadd.f32 0.0, %v925
    %v927 = vpop.f32.mrb[0].mxu0
    %928 = vmatprep.mubr.f32.mxu0 0.0
    %929 = vmatmul.mubr.f32.gmra.mrb[0].mxu0 %v343
    %v930 = vpop.f32.mrb[0].mxu0
    %v931 = vadd.f32 0.0, %v930
    %v932 = vpop.f32.mrb[0].mxu0
    %933 = vmatprep.mubr.f32.mxu0 0.0
    %934 = vmatmul.mubr.f32.gmra.mrb[0].mxu0 %v346
    %v935 = vpop.f32.mrb[0].mxu0
    %v936 = vadd.f32 0.0, %v935
    %v937 = vpop.f32.mrb[0].mxu0
    %938 = vmatprep.mubr.f32.mxu0 0.0
    %939 = vmatmul.mubr.f32.gmra.mrb[0].mxu0 %v349
    %v940 = vpop.f32.mrb[0].mxu0
    %v941 = vadd.f32 0.0, %v940
    %v942 = vpop.f32.mrb[0].mxu0
    %943 = vmatprep.mubr.f32.mxu0 0.0
    %944 = vmatmul.mubr.f32.gmra.mrb[0].mxu0 %v352
    %v945 = vpop.f32.mrb[0].mxu0
    %v946 = vadd.f32 0.0, %v945
    %v947 = vpop.f32.mrb[0].mxu0
    %948 = vmatprep.mubr.f32.mxu0 0.0
    %949 = vmatmul.mubr.f32.gmra.mrb[0].mxu0 %v355
    %v950 = vpop.f32.mrb[0].mxu0
    %v951 = vadd.f32 0.0, %v950
    %v952 = vpop.f32.mrb[0].mxu0
    %953 = vmatprep.mubr.f32.mxu0 0.0
    %954 = vmatmul.mubr.f32.gmra.mrb[0].mxu0 %v358
    %v955 = vpop.f32.mrb[0].mxu0
    %v956 = vadd.f32 0.0, %v955
    %v957 = vpop.f32.mrb[0].mxu0
    %958 = vmatprep.mubr.f32.mxu0 0.0
    %959 = vmatmul.mubr.f32.gmra.mrb[0].mxu0 %v361
    %v960 = vpop.f32.mrb[0].mxu0
    %v961 = vadd.f32 0.0, %v960
    %v962 = vpop.f32.mrb[0].mxu0
    %963 = vmatprep.mubr.f32.mxu0 0.0
    %964 = vmatmul.mubr.f32.gmra.mrb[0].mxu0 %v364
    %v965 = vpop.f32.mrb[0].mxu0
    %v966 = vadd.f32 0.0, %v965
    %v967 = vpop.f32.mrb[0].mxu0
    %968 = vmatprep.mubr.f32.mxu0 0.0
    %969 = vmatmul.mubr.f32.gmra.mrb[0].mxu0 %v367
    %v970 = vpop.f32.mrb[0].mxu0
    %v971 = vadd.f32 0.0, %v970
    %v972 = vpop.f32.mrb[0].mxu0
    %973 = vmatprep.mubr.f32.mxu0 0.0
    %974 = vmatmul.mubr.f32.gmra.mrb[0].mxu0 %v370
    %v975 = vpop.f32.mrb[0].mxu0
    %v976 = vadd.f32 0.0, %v975
    %v977 = vpop.f32.mrb[0].mxu0
    %978 = vmatprep.mubr.f32.mxu0 0.0
    %979 = vmatmul.mubr.f32.gmra.mrb[0].mxu0 %v373
    %v980 = vpop.f32.mrb[0].mxu0
    %v981 = vadd.f32 0.0, %v980
    %v982 = vpop.f32.mrb[0].mxu0
    %983 = vmatprep.mubr.f32.mxu0 0.0
    %984 = vmatmul.mubr.f32.gmra.mrb[0].mxu0 %v376
    %v985 = vpop.f32.mrb[0].mxu0
    %v986 = vadd.f32 0.0, %v985
    %v987 = vpop.f32.mrb[0].mxu0
    %988 = vmatprep.mubr.f32.mxu0 0.0
    %989 = vmatmul.mubr.f32.gmra.mrb[0].mxu0 %v379
    %v990 = vpop.f32.mrb[0].mxu0
    %v991 = vadd.f32 0.0, %v990
    %v992 = vpop.f32.mrb[0].mxu0
    %993 = vmatprep.mubr.f32.mxu0 0.0
    %994 = vmatmul.mubr.f32.gmra.mrb[0].mxu0 %v382
    %v995 = vpop.f32.mrb[0].mxu0
    %v996 = vadd.f32 0.0, %v995
    %v997 = vpop.f32.mrb[0].mxu0
    %998 = vmatprep.mubr.f32.mxu0 0.0
    %999 = vmatmul.mubr.f32.gmra.mrb[0].mxu0 %v385
    %v1000 = vpop.f32.mrb[0].mxu0
    %v1001 = vadd.f32 0.0, %v1000
    %v1002 = vpop.f32.mrb[0].mxu0
    %1003 = vmatprep.mubr.f32.mxu0 0.0
    %1004 = vmatmul.mubr.f32.gmra.mrb[0].mxu0 %v388
    %v1005 = vpop.f32.mrb[0].mxu0
    %v1006 = vadd.f32 0.0, %v1005
    %v1007 = vpop.f32.mrb[0].mxu0
    %1008 = vmatprep.mubr.f32.mxu0 0.0
    %1009 = vmatmul.mubr.f32.gmra.mrb[0].mxu0 %v391
    %v1010 = vpop.f32.mrb[0].mxu0
    %v1011 = vadd.f32 0.0, %v1010
    %v1012 = vpop.f32.mrb[0].mxu0
    %1013 = vmatprep.mubr.f32.mxu0 0.0
    %1014 = vmatmul.mubr.f32.gmra.mrb[0].mxu0 %v394
    %v1015 = vpop.f32.mrb[0].mxu0
    %v1016 = vadd.f32 0.0, %v1015
    %v1017 = vpop.f32.mrb[0].mxu0
    %1018 = vmatprep.mubr.f32.mxu0 0.0
    %1019 = vmatmul.mubr.f32.gmra.mrb[0].mxu0 %v397
    %v1020 = vpop.f32.mrb[0].mxu0
    %v1021 = vadd.f32 0.0, %v1020
    %v1022 = vpop.f32.mrb[0].mxu0
    %1023 = vmatprep.mubr.f32.mxu0 0.0
    %1024 = vmatmul.mubr.f32.gmra.mrb[0].mxu0 %v400
    %v1025 = vpop.f32.mrb[0].mxu0
    %v1026 = vadd.f32 0.0, %v1025
    %v1027 = vpop.f32.mrb[0].mxu0
    %1028 = vmatprep.mubr.f32.mxu0 0.0
    %1029 = vmatmul.mubr.f32.gmra.mrb[0].mxu0 %v403
    %v1030 = vpop.f32.mrb[0].mxu0
    %v1031 = vadd.f32 0.0, %v1030
    %v1032 = vpop.f32.mrb[0].mxu0
    %1033 = vmatprep.mubr.f32.mxu0 0.0
    %1034 = vmatmul.mubr.f32.gmra.mrb[0].mxu0 %v406
    %v1035 = vpop.f32.mrb[0].mxu0
    %v1036 = vadd.f32 0.0, %v1035
    %v1037 = vpop.f32.mrb[0].mxu0
    %1038 = vmatprep.mubr.f32.mxu0 0.0
    %1039 = vmatmul.mubr.f32.gmra.mrb[0].mxu0 %v409
    %v1040 = vpop.f32.mrb[0].mxu0
    %v1041 = vadd.f32 0.0, %v1040
    %v1042 = vpop.f32.mrb[0].mxu0
    %1043 = vmatprep.mubr.f32.mxu0 0.0
    %1044 = vmatmul.mubr.f32.gmra.mrb[0].mxu0 %v412
    %v1045 = vpop.f32.mrb[0].mxu0
    %v1046 = vadd.f32 0.0, %v1045
    %v1047 = vpop.f32.mrb[0].mxu0
    %1048 = vmatprep.mubr.f32.mxu0 0.0
    %1049 = vmatmul.mubr.f32.gmra.mrb[0].mxu0 %v415
    %v1050 = vpop.f32.mrb[0].mxu0
    %v1051 = vadd.f32 0.0, %v1050
    %v1052 = vpop.f32.mrb[0].mxu0
    %1053 = vmatprep.mubr.f32.mxu0 0.0
    %1054 = vmatmul.mubr.f32.gmra.mrb[0].mxu0 %v418
    %v1055 = vpop.f32.mrb[0].mxu0
    %v1056 = vadd.f32 0.0, %v1055
    %v1057 = vpop.f32.mrb[0].mxu0
    %1058 = vmatprep.mubr.f32.mxu0 0.0
    %1059 = vmatmul.mubr.f32.gmra.mrb[0].mxu0 %v421
    %v1060 = vpop.f32.mrb[0].mxu0
    %v1061 = vadd.f32 0.0, %v1060
    %v1062 = vpop.f32.mrb[0].mxu0
    %1063 = vmatprep.mubr.f32.mxu0 0.0
    %1064 = vmatmul.mubr.f32.gmra.mrb[0].mxu0 %v424
    %v1065 = vpop.f32.mrb[0].mxu0
    %v1066 = vadd.f32 0.0, %v1065
    %v1067 = vpop.f32.mrb[0].mxu0
    %1068 = vmatprep.mubr.f32.mxu0 0.0
    %1069 = vmatmul.mubr.f32.gmra.mrb[0].mxu0 %v427
    %v1070 = vpop.f32.mrb[0].mxu0
    %v1071 = vadd.f32 0.0, %v1070
    %v1072 = vpop.f32.mrb[0].mxu0
    %1073 = vmatprep.mubr.f32.mxu0 0.0
    %1074 = vmatmul.mubr.f32.gmra.mrb[0].mxu0 %v430
    %v1075 = vpop.f32.mrb[0].mxu0
    %v1076 = vadd.f32 0.0, %v1075
    %v1077 = vpop.f32.mrb[0].mxu0
    %1078 = vmatprep.mubr.f32.mxu0 0.0
    %1079 = vmatmul.mubr.f32.gmra.mrb[0].mxu0 %v433
    %v1080 = vpop.f32.mrb[0].mxu0
    %v1081 = vadd.f32 0.0, %v1080
    %v1082 = vpop.f32.mrb[0].mxu0
    %1083 = vmatprep.mubr.f32.mxu0 0.0
    %1084 = vmatmul.mubr.f32.gmra.mrb[0].mxu0 %v436
    %v1085 = vpop.f32.mrb[0].mxu0
    %v1086 = vadd.f32 0.0, %v1085
    %v1087 = vpop.f32.mrb[0].mxu0
    %1088 = vmatprep.mubr.f32.mxu0 0.0
    %1089 = vmatmul.mubr.f32.gmra.mrb[0].mxu0 %v439
    %v1090 = vpop.f32.mrb[0].mxu0
    %v1091 = vadd.f32 0.0, %v1090
    %v1092 = vpop.f32.mrb[0].mxu0
    %1093 = vmatprep.mubr.f32.mxu0 0.0
    %1094 = vmatmul.mubr.f32.gmra.mrb[0].mxu0 %v442
    %v1095 = vpop.f32.mrb[0].mxu0
    %v1096 = vadd.f32 0.0, %v1095
    %v1097 = vpop.f32.mrb[0].mxu0
    %1098 = vmatprep.mubr.f32.mxu0 0.0
    %1099 = vmatmul.mubr.f32.gmra.mrb[0].mxu0 %v445
    %v1100 = vpop.f32.mrb[0].mxu0
    %v1101 = vadd.f32 0.0, %v1100
    %v1102 = vpop.f32.mrb[0].mxu0
    %1103 = vmatprep.mubr.f32.mxu0 0.0
    %1104 = vmatmul.mubr.f32.gmra.mrb[0].mxu0 %v448
    %v1105 = vpop.f32.mrb[0].mxu0
    %v1106 = vadd.f32 0.0, %v1105
    %v1107 = vpop.f32.mrb[0].mxu0
    %1108 = vmatprep.mubr.f32.mxu0 0.0
    %1109 = vmatmul.mubr.f32.gmra.mrb[0].mxu0 %v451
    %v1110 = vpop.f32.mrb[0].mxu0
    %v1111 = vadd.f32 0.0, %v1110
    %v1112 = vpop.f32.mrb[0].mxu0
    %1113 = vmatprep.mubr.f32.mxu0 0.0
    %1114 = vmatmul.mubr.f32.gmra.mrb[0].mxu0 %v454
    %v1115 = vpop.f32.mrb[0].mxu0
    %v1116 = vadd.f32 0.0, %v1115
    %v1117 = vpop.f32.mrb[0].mxu0
    %1118 = vmatprep.mubr.f32.mxu0 0.0
    %1119 = vmatmul.mubr.f32.gmra.mrb[0].mxu0 %v457
    %v1120 = vpop.f32.mrb[0].mxu0
    %v1121 = vadd.f32 0.0, %v1120
    %v1122 = vpop.f32.mrb[0].mxu0
    %1123 = vmatprep.mubr.f32.mxu0 0.0
    %1124 = vmatmul.mubr.f32.gmra.mrb[0].mxu0 %v460
    %v1125 = vpop.f32.mrb[0].mxu0
    %v1126 = vadd.f32 0.0, %v1125
    %v1127 = vpop.f32.mrb[0].mxu0
    %1128 = vmatprep.mubr.f32.mxu0 0.0
    %1129 = vmatmul.mubr.f32.gmra.mrb[0].mxu0 %v463
    %v1130 = vpop.f32.mrb[0].mxu0
    %v1131 = vadd.f32 0.0, %v1130
    %v1132 = vpop.f32.mrb[0].mxu0
    %1133 = vmatprep.mubr.f32.mxu0 0.0
    %1134 = vmatmul.mubr.f32.gmra.mrb[0].mxu0 %v466
    %v1135 = vpop.f32.mrb[0].mxu0
    %v1136 = vadd.f32 0.0, %v1135
    %v1137 = vpop.f32.mrb[0].mxu0
    %1138 = vmatprep.mubr.f32.mxu0 0.0
    %1139 = vmatmul.mubr.f32.gmra.mrb[0].mxu0 %v469
    %v1140 = vpop.f32.mrb[0].mxu0
    %v1141 = vadd.f32 0.0, %v1140
    %v1142 = vpop.f32.mrb[0].mxu0
    %1143 = vmatprep.mubr.f32.mxu0 0.0
    %1144 = vmatmul.mubr.f32.gmra.mrb[0].mxu0 %v472
    %v1145 = vpop.f32.mrb[0].mxu0
    %v1146 = vadd.f32 0.0, %v1145
    %v1147 = vpop.f32.mrb[0].mxu0
    %1148 = vmatprep.mubr.f32.mxu0 0.0
    %1149 = vmatmul.mubr.f32.gmra.mrb[0].mxu0 %v475
    %v1150 = vpop.f32.mrb[0].mxu0
    %v1151 = vadd.f32 0.0, %v1150
    %v1152 = vpop.f32.mrb[0].mxu0
    %1153 = vmatprep.mubr.f32.mxu0 0.0
    %1154 = vmatmul.mubr.f32.gmra.mrb[0].mxu0 %v478
    %v1155 = vpop.f32.mrb[0].mxu0
    %v1156 = vadd.f32 0.0, %v1155
    %v1157 = vpop.f32.mrb[0].mxu0
    %1158 = vmatprep.mubr.f32.mxu0 0.0
    %1159 = vmatmul.mubr.f32.gmra.mrb[0].mxu0 %v481
    %v1160 = vpop.f32.mrb[0].mxu0
    %v1161 = vadd.f32 0.0, %v1160
    %v1162 = vpop.f32.mrb[0].mxu0
    %1163 = vmatprep.mubr.f32.mxu0 0.0
    %1164 = vmatmul.mubr.f32.gmra.mrb[0].mxu0 %v484
    %v1165 = vpop.f32.mrb[0].mxu0
    %v1166 = vadd.f32 0.0, %v1165
    %v1167 = vpop.f32.mrb[0].mxu0
    %1168 = vmatprep.mubr.f32.mxu0 0.0
    %1169 = vmatmul.mubr.f32.gmra.mrb[0].mxu0 %v487
    %v1170 = vpop.f32.mrb[0].mxu0
    %v1171 = vadd.f32 0.0, %v1170
    %v1172 = vpop.f32.mrb[0].mxu0
    %1173 = vmatprep.mubr.f32.mxu0 0.0
    %1174 = vmatmul.mubr.f32.gmra.mrb[0].mxu0 %v490
    %v1175 = vpop.f32.mrb[0].mxu0
    %v1176 = vadd.f32 0.0, %v1175
    %v1177 = vpop.f32.mrb[0].mxu0
    %1178 = vmatprep.mubr.f32.mxu0 0.0
    %1179 = vmatmul.mubr.f32.gmra.mrb[0].mxu0 %v493
    %v1180 = vpop.f32.mrb[0].mxu0
    %v1181 = vadd.f32 0.0, %v1180
    %v1182 = vpop.f32.mrb[0].mxu0
    %1183 = vmatprep.mubr.f32.mxu0 0.0
    %1184 = vmatmul.mubr.f32.gmra.mrb[0].mxu0 %v496
    %v1185 = vpop.f32.mrb[0].mxu0
    %v1186 = vadd.f32 0.0, %v1185
    %v1187 = vpop.f32.mrb[0].mxu0
    %1188 = vmatprep.mubr.f32.mxu0 0.0
    %1189 = vmatmul.mubr.f32.gmra.mrb[0].mxu0 %v499
    %v1190 = vpop.f32.mrb[0].mxu0
    %v1191 = vadd.f32 0.0, %v1190
    %v1192 = vpop.f32.mrb[0].mxu0
    %1193 = vmatprep.mubr.f32.mxu0 0.0
    %1194 = vmatmul.mubr.f32.gmra.mrb[0].mxu0 %v502
    %v1195 = vpop.f32.mrb[0].mxu0
    %v1196 = vadd.f32 0.0, %v1195
    %v1197 = vpop.f32.mrb[0].mxu0
    %1198 = vmatprep.mubr.f32.mxu0 0.0
    %1199 = vmatmul.mubr.f32.gmra.mrb[0].mxu0 %v505
    %v1200 = vpop.f32.mrb[0].mxu0
    %v1201 = vadd.f32 0.0, %v1200
    %v1202 = vpop.f32.mrb[0].mxu0
    %1203 = vmatprep.mubr.f32.mxu0 0.0
    %1204 = vmatmul.mubr.f32.gmra.mrb[0].mxu0 %v508
    %v1205 = vpop.f32.mrb[0].mxu0
    %v1206 = vadd.f32 0.0, %v1205
    %v1207 = vpop.f32.mrb[0].mxu0
    %1208 = vmatprep.mubr.f32.mxu0 0.0
    %1209 = vmatmul.mubr.f32.gmra.mrb[0].mxu0 %v511
    %v1210 = vpop.f32.mrb[0].mxu0
    %v1211 = vadd.f32 0.0, %v1210
    %v1212 = vpop.f32.mrb[0].mxu0
    %1213 = vmatprep.mubr.f32.mxu0 0.0
    %1214 = vmatmul.mubr.f32.gmra.mrb[0].mxu0 %v514
    %v1215 = vpop.f32.mrb[0].mxu0
    %v1216 = vadd.f32 0.0, %v1215
    %v1217 = vpop.f32.mrb[0].mxu0
    %1218 = vmatprep.mubr.f32.mxu0 0.0
    %1219 = vmatmul.mubr.f32.gmra.mrb[0].mxu0 %v517
    %v1220 = vpop.f32.mrb[0].mxu0
    %v1221 = vadd.f32 0.0, %v1220
    %v1222 = vpop.f32.mrb[0].mxu0
    %1223 = vmatprep.mubr.f32.mxu0 0.0
    %1224 = vmatmul.mubr.f32.gmra.mrb[0].mxu0 %v520
    %v1225 = vpop.f32.mrb[0].mxu0
    %v1226 = vadd.f32 0.0, %v1225
    %v1227 = vpop.f32.mrb[0].mxu0
    %1228 = vmatprep.mubr.f32.mxu0 0.0
    %1229 = vmatmul.mubr.f32.gmra.mrb[0].mxu0 %v523
    %v1230 = vpop.f32.mrb[0].mxu0
    %v1231 = vadd.f32 0.0, %v1230
    %v1232 = vpop.f32.mrb[0].mxu0
    %1233 = vmatprep.mubr.f32.mxu0 0.0
    %1234 = vmatmul.mubr.f32.gmra.mrb[0].mxu0 %v526
    %v1235 = vpop.f32.mrb[0].mxu0
    %v1236 = vadd.f32 0.0, %v1235
    %v1237 = vpop.f32.mrb[0].mxu0
    %1238 = vmatprep.mubr.f32.mxu0 0.0
    %1239 = vmatmul.mubr.f32.gmra.mrb[0].mxu0 %v529
    %v1240 = vpop.f32.mrb[0].mxu0
    %v1241 = vadd.f32 0.0, %v1240
    %v1242 = vpop.f32.mrb[0].mxu0
    %1243 = vmatprep.mubr.f32.mxu0 0.0
    %1244 = vmatmul.mubr.f32.gmra.mrb[0].mxu0 %v532
    %v1245 = vpop.f32.mrb[0].mxu0
    %v1246 = vadd.f32 0.0, %v1245
    %v1247 = vpop.f32.mrb[0].mxu0
    %1248 = vdwg.mxu0
    %1249 = vst [vmem:[#allocation2] sm:$0xff] %v601
    %1250 = vst [vmem:[#allocation2 + $0x8] sm:$0xff] %v606
    %1251 = vst [vmem:[#allocation2 + $0x10] sm:$0xff] %v611
    %1252 = vst [vmem:[#allocation2 + $0x18] sm:$0xff] %v616
    %1253 = vst [vmem:[#allocation2 + $0x20] sm:$0xff] %v621
    %1254 = vst [vmem:[#allocation2 + $0x28] sm:$0xff] %v626
    %1255 = vst [vmem:[#allocation2 + $0x30] sm:$0xff] %v631
    %1256 = vst [vmem:[#allocation2 + $0x38] sm:$0xff] %v636
    %1257 = vst [vmem:[#allocation2 + $0x40] sm:$0xff] %v641
    %1258 = vst [vmem:[#allocation2 + $0x48] sm:$0xff] %v646
    %1259 = vst [vmem:[#allocation2 + $0x50] sm:$0xff] %v651
    %1260 = vst [vmem:[#allocation2 + $0x58] sm:$0xff] %v656
    %1261 = vst [vmem:[#allocation2 + $0x60] sm:$0xff] %v661
    %1262 = vst [vmem:[#allocation2 + $0x68] sm:$0xff] %v666
    %1263 = vst [vmem:[#allocation2 + $0x70] sm:$0xff] %v671
    %1264 = vst [vmem:[#allocation2 + $0x78] sm:$0xff] %v676
    %1265 = vst [vmem:[#allocation2 + $0x80] sm:$0xff] %v681
    %1266 = vst [vmem:[#allocation2 + $0x88] sm:$0xff] %v686
    %1267 = vst [vmem:[#allocation2 + $0x90] sm:$0xff] %v691
    %1268 = vst [vmem:[#allocation2 + $0x98] sm:$0xff] %v696
    %1269 = vst [vmem:[#allocation2 + $0xa0] sm:$0xff] %v701
    %1270 = vst [vmem:[#allocation2 + $0xa8] sm:$0xff] %v706
    %1271 = vst [vmem:[#allocation2 + $0xb0] sm:$0xff] %v711
    %1272 = vst [vmem:[#allocation2 + $0xb8] sm:$0xff] %v716
    %1273 = vst [vmem:[#allocation2 + $0xc0] sm:$0xff] %v721
    %1274 = vst [vmem:[#allocation2 + $0xc8] sm:$0xff] %v726
    %1275 = vst [vmem:[#allocation2 + $0xd0] sm:$0xff] %v731
    %1276 = vst [vmem:[#allocation2 + $0xd8] sm:$0xff] %v736
    %1277 = vst [vmem:[#allocation2 + $0xe0] sm:$0xff] %v741
    %1278 = vst [vmem:[#allocation2 + $0xe8] sm:$0xff] %v746
    %1279 = vst [vmem:[#allocation2 + $0xf0] sm:$0xff] %v751
    %1280 = vst [vmem:[#allocation2 + $0xf8] sm:$0xff] %v756
    %1281 = vst [vmem:[#allocation2 + $0x100] sm:$0xff] %v761
    %1282 = vst [vmem:[#allocation2 + $0x108] sm:$0xff] %v766
    %1283 = vst [vmem:[#allocation2 + $0x110] sm:$0xff] %v771
    %1284 = vst [vmem:[#allocation2 + $0x118] sm:$0xff] %v776
    %1285 = vst [vmem:[#allocation2 + $0x120] sm:$0xff] %v781
    %1286 = vst [vmem:[#allocation2 + $0x128] sm:$0xff] %v786
    %1287 = vst [vmem:[#allocation2 + $0x130] sm:$0xff] %v791
    %1288 = vst [vmem:[#allocation2 + $0x138] sm:$0xff] %v796
    %1289 = vst [vmem:[#allocation2 + $0x140] sm:$0xff] %v801
    %1290 = vst [vmem:[#allocation2 + $0x148] sm:$0xff] %v806
    %1291 = vst [vmem:[#allocation2 + $0x150] sm:$0xff] %v811
    %1292 = vst [vmem:[#allocation2 + $0x158] sm:$0xff] %v816
    %1293 = vst [vmem:[#allocation2 + $0x160] sm:$0xff] %v821
    %1294 = vst [vmem:[#allocation2 + $0x168] sm:$0xff] %v826
    %1295 = vst [vmem:[#allocation2 + $0x170] sm:$0xff] %v831
    %1296 = vst [vmem:[#allocation2 + $0x178] sm:$0xff] %v836
    %1297 = vst [vmem:[#allocation2 + $0x180] sm:$0xff] %v841
    %1298 = vst [vmem:[#allocation2 + $0x188] sm:$0xff] %v846
    %1299 = vst [vmem:[#allocation2 + $0x190] sm:$0xff] %v851
    %1300 = vst [vmem:[#allocation2 + $0x198] sm:$0xff] %v856
    %1301 = vst [vmem:[#allocation2 + $0x1a0] sm:$0xff] %v861
    %1302 = vst [vmem:[#allocation2 + $0x1a8] sm:$0xff] %v866
    %1303 = vst [vmem:[#allocation2 + $0x1b0] sm:$0xff] %v871
    %1304 = vst [vmem:[#allocation2 + $0x1b8] sm:$0xff] %v876
    %1305 = vst [vmem:[#allocation2 + $0x1c0] sm:$0xff] %v881
    %1306 = vst [vmem:[#allocation2 + $0x1c8] sm:$0xff] %v886
    %1307 = vst [vmem:[#allocation2 + $0x1d0] sm:$0xff] %v891
    %1308 = vst [vmem:[#allocation2 + $0x1d8] sm:$0xff] %v896
    %1309 = vst [vmem:[#allocation2 + $0x1e0] sm:$0xff] %v901
    %1310 = vst [vmem:[#allocation2 + $0x1e8] sm:$0xff] %v906
    %1311 = vst [vmem:[#allocation2 + $0x1f0] sm:$0xff] %v911
    %1312 = vst [vmem:[#allocation2 + $0x1f8] sm:$0xff] %v916
    %1313 = vst [vmem:[#allocation2 + $0x200] sm:$0xff] %v921
    %1314 = vst [vmem:[#allocation2 + $0x208] sm:$0xff] %v926
    %1315 = vst [vmem:[#allocation2 + $0x210] sm:$0xff] %v931
    %1316 = vst [vmem:[#allocation2 + $0x218] sm:$0xff] %v936
    %1317 = vst [vmem:[#allocation2 + $0x220] sm:$0xff] %v941
    %1318 = vst [vmem:[#allocation2 + $0x228] sm:$0xff] %v946
    %1319 = vst [vmem:[#allocation2 + $0x230] sm:$0xff] %v951
    %1320 = vst [vmem:[#allocation2 + $0x238] sm:$0xff] %v956
    %1321 = vst [vmem:[#allocation2 + $0x240] sm:$0xff] %v961
    %1322 = vst [vmem:[#allocation2 + $0x248] sm:$0xff] %v966
    %1323 = vst [vmem:[#allocation2 + $0x250] sm:$0xff] %v971
    %1324 = vst [vmem:[#allocation2 + $0x258] sm:$0xff] %v976
    %1325 = vst [vmem:[#allocation2 + $0x260] sm:$0xff] %v981
    %1326 = vst [vmem:[#allocation2 + $0x268] sm:$0xff] %v986
    %1327 = vst [vmem:[#allocation2 + $0x270] sm:$0xff] %v991
    %1328 = vst [vmem:[#allocation2 + $0x278] sm:$0xff] %v996
    %1329 = vst [vmem:[#allocation2 + $0x280] sm:$0xff] %v1001
    %1330 = vst [vmem:[#allocation2 + $0x288] sm:$0xff] %v1006
    %1331 = vst [vmem:[#allocation2 + $0x290] sm:$0xff] %v1011
    %1332 = vst [vmem:[#allocation2 + $0x298] sm:$0xff] %v1016
    %1333 = vst [vmem:[#allocation2 + $0x2a0] sm:$0xff] %v1021
    %1334 = vst [vmem:[#allocation2 + $0x2a8] sm:$0xff] %v1026
    %1335 = vst [vmem:[#allocation2 + $0x2b0] sm:$0xff] %v1031
    %1336 = vst [vmem:[#allocation2 + $0x2b8] sm:$0xff] %v1036
    %1337 = vst [vmem:[#allocation2 + $0x2c0] sm:$0xff] %v1041
    %1338 = vst [vmem:[#allocation2 + $0x2c8] sm:$0xff] %v1046
    %1339 = vst [vmem:[#allocation2 + $0x2d0] sm:$0xff] %v1051
    %1340 = vst [vmem:[#allocation2 + $0x2d8] sm:$0xff] %v1056
    %1341 = vst [vmem:[#allocation2 + $0x2e0] sm:$0xff] %v1061
    %1342 = vst [vmem:[#allocation2 + $0x2e8] sm:$0xff] %v1066
    %1343 = vst [vmem:[#allocation2 + $0x2f0] sm:$0xff] %v1071
    %1344 = vst [vmem:[#allocation2 + $0x2f8] sm:$0xff] %v1076
    %1345 = vst [vmem:[#allocation2 + $0x300] sm:$0xff] %v1081
    %1346 = vst [vmem:[#allocation2 + $0x308] sm:$0xff] %v1086
    %1347 = vst [vmem:[#allocation2 + $0x310] sm:$0xff] %v1091
    %1348 = vst [vmem:[#allocation2 + $0x318] sm:$0xff] %v1096
    %1349 = vst [vmem:[#allocation2 + $0x320] sm:$0xff] %v1101
    %1350 = vst [vmem:[#allocation2 + $0x328] sm:$0xff] %v1106
    %1351 = vst [vmem:[#allocation2 + $0x330] sm:$0xff] %v1111
    %1352 = vst [vmem:[#allocation2 + $0x338] sm:$0xff] %v1116
    %1353 = vst [vmem:[#allocation2 + $0x340] sm:$0xff] %v1121
    %1354 = vst [vmem:[#allocation2 + $0x348] sm:$0xff] %v1126
    %1355 = vst [vmem:[#allocation2 + $0x350] sm:$0xff] %v1131
    %1356 = vst [vmem:[#allocation2 + $0x358] sm:$0xff] %v1136
    %1357 = vst [vmem:[#allocation2 + $0x360] sm:$0xff] %v1141
    %1358 = vst [vmem:[#allocation2 + $0x368] sm:$0xff] %v1146
    %1359 = vst [vmem:[#allocation2 + $0x370] sm:$0xff] %v1151
    %1360 = vst [vmem:[#allocation2 + $0x378] sm:$0xff] %v1156
    %1361 = vst [vmem:[#allocation2 + $0x380] sm:$0xff] %v1161
    %1362 = vst [vmem:[#allocation2 + $0x388] sm:$0xff] %v1166
    %1363 = vst [vmem:[#allocation2 + $0x390] sm:$0xff] %v1171
    %1364 = vst [vmem:[#allocation2 + $0x398] sm:$0xff] %v1176
    %1365 = vst [vmem:[#allocation2 + $0x3a0] sm:$0xff] %v1181
    %1366 = vst [vmem:[#allocation2 + $0x3a8] sm:$0xff] %v1186
    %1367 = vst [vmem:[#allocation2 + $0x3b0] sm:$0xff] %v1191
    %1368 = vst [vmem:[#allocation2 + $0x3b8] sm:$0xff] %v1196
    %1369 = vst [vmem:[#allocation2 + $0x3c0] sm:$0xff] %v1201
    %1370 = vst [vmem:[#allocation2 + $0x3c8] sm:$0xff] %v1206
    %1371 = vst [vmem:[#allocation2 + $0x3d0] sm:$0xff] %v1211
    %1372 = vst [vmem:[#allocation2 + $0x3d8] sm:$0xff] %v1216
    %1373 = vst [vmem:[#allocation2 + $0x3e0] sm:$0xff] %v1221
    %1374 = vst [vmem:[#allocation2 + $0x3e8] sm:$0xff] %v1226
    %1375 = vst [vmem:[#allocation2 + $0x3f0] sm:$0xff] %v1231
    %1376 = vst [vmem:[#allocation2 + $0x3f8] sm:$0xff] %v1236
    %1377 = vst [vmem:[#allocation2 + $0x400] sm:$0xff] %v1241
    %1378 = vst [vmem:[#allocation2 + $0x408] sm:$0xff] %v1246
    // Predicated region
    $region10: #{tpu_custom_call.1} parent=1 // pred_check
      _
    $region11: #{tpu_custom_call.1} parent=1 // pred_check_branch
      %1380 = sbr.rel (0) target = $region13
    $region12: #{tpu_custom_call.1} parent=1 // pred_region
      %s1382 = ssub.s32 16640, 16640
      %1383 = vsyncadd [#allocation3], %s1382
      %s1384 = sshll.u32 [#allocation2], 4
      %s1385 = int_to_ptr.vmem [resolvable:$true] %s1384
      %1390 = dma.vmem_to_hbm [thread:$0]  %s1385, 16640, %s2, [#allocation3], 128, 128, 8
    $region13: #{tpu_custom_call.1} parent=1 // pred_fallthru
      _
    // Predicated region
    $region14: #{tpu_custom_call.1} parent=1 // pred_check
      _
    $region15: #{tpu_custom_call.1} parent=1 // pred_check_branch
      %1392 = sbr.rel (0) target = $region17
    $region16: #{tpu_custom_call.1} parent=1 // pred_region
      %1393 = dma.done [#allocation3], 16640
    $region17: #{tpu_custom_call.1} parent=1 // pred_fallthru
      _
    %1394 = vsyncpa [#allocation3], 1

</llo_original>
